<compile_context>
chip_gen: v7x
topology: tpu7x:2x2x1
jax: 0.10.0
libtpu: 0.0.40
codegen_flags: <defaults>
</compile_context>

<pallas_src>
import functools

import jax
import jax.numpy as jnp
import numpy as np
from jax import lax
from jax.experimental import pallas as pl
from jax.experimental.pallas import tpu as pltpu


# ----------------------------------------------------------------------------
# Pallas kernel: one batch element per grid step, full (N, C) tile in VMEM.
# ----------------------------------------------------------------------------
def _experts_attention_kernel(
    x_ref, disp_ref, comb_ref, sel_qkv_ref, sel_cb_ref,
    wqkv_ref, wproj_ref, o_ref, attn_ref,
    *, num_heads,
):
    x = x_ref[0]                                 # (N, C) input dtype
    disp = disp_ref[0].astype(jnp.bfloat16)      # (N, E) gate (0/1 -> exact in bf16)
    comb = comb_ref[0].astype(jnp.bfloat16)      # (N, E) combine weights

    N, C = x.shape
    H = num_heads
    Dh = C // H                                  # == head_dim (asserted in wrapper)

    # ---- ExpertsChooseContract, fused: one (N,C)x(C,3C) bf16 matmul, f32 acc.
    # Attention scale is already folded into the q columns of wqkv (host-side).
    qkv = jnp.dot(x.astype(jnp.bfloat16), wqkv_ref[...],
                  preferred_element_type=jnp.float32)              # (N, 3C) f32
    # Dispatch gate expanded to width 3C via a tiny bf16 selector matmul on the MXU
    # (avoids E single-lane slices / cross-lane broadcasts of the (N, E) gate).
    disp_wide = jnp.dot(disp, sel_qkv_ref[...],
                        preferred_element_type=jnp.float32)        # (N, 3C) f32
    # Single cast: all downstream MXU operands read this bf16 tensor.
    qkv = (qkv * disp_wide).astype(jnp.bfloat16)                   # (N, 3C) bf16

    # ---- Scaled dot-product attention per head (static unroll), f32 softmax math.
    contract_last = (((1,), (1,)), ((), ()))
    for h in range(H):
        q = qkv[:, h * Dh:(h + 1) * Dh]                            # scale pre-folded
        k = qkv[:, C + h * Dh: C + (h + 1) * Dh]
        v = qkv[:, 2 * C + h * Dh: 2 * C + (h + 1) * Dh]
        # q @ k^T without materializing k.T: contract the natural last dims.
        s = lax.dot_general(q, k, contract_last,
                            preferred_element_type=jnp.float32)    # (N, N) f32
        s = s - jnp.max(s, axis=-1, keepdims=True)
        p = jnp.exp(s)
        l = jnp.sum(p, axis=-1, keepdims=True)                     # (N, 1)
        o_h = jnp.dot(p.astype(jnp.bfloat16), v,
                      preferred_element_type=jnp.float32)          # (N, Dh) f32
        # Deferred softmax normalization: (N,Dh) multiplies instead of (N,N).
        attn_ref[:, h * Dh:(h + 1) * Dh] = o_h * pl.reciprocal(l, approx=True)
    # TODO(synk): for large N, switch to a KV-tiled online-softmax (flash-style)
    # loop so the (N, N) score matrix never materializes in VMEM.

    # ---- ExpertsChooseExpand, fused: combine gate (width C) and the combined
    # bias come from ONE tiny (N,E)x(E,2C) bf16 matmul; then one (N,C)x(C,C)
    # bf16 matmul with f32 accumulation.
    cb = jnp.dot(comb, sel_cb_ref[...],
                 preferred_element_type=jnp.float32)               # (N, 2C) f32
    comb_wide = cb[:, :C]
    bias = cb[:, C:]
    out = jnp.dot((attn_ref[...] * comb_wide).astype(jnp.bfloat16), wproj_ref[...],
                  preferred_element_type=jnp.float32)              # (N, C) f32
    o_ref[0] = (out + bias).astype(o_ref.dtype)


def _pick_vmem_limit():
    """Scoped-VMEM budget with headroom; safe on v5e/v6e (128 MiB) and v7x (64 MiB)."""
    try:
        cap = pltpu.get_tpu_info().vmem_capacity_bytes
        return int(max(32 * 1024 * 1024,
                       min(cap - 16 * 1024 * 1024, 100 * 1024 * 1024)))
    except Exception:
        return 48 * 1024 * 1024  # universally safe fallback


# ----------------------------------------------------------------------------
# Wrapper: host-side weight repacking + pallas_call with full-array blocks.
# ----------------------------------------------------------------------------
def experts_choose_attention(
    x, combine_array, dispatch_mask, w_qkv, w_proj, b_proj,
    *, num_heads, num_experts,
):
    B, N, C = x.shape
    E = num_experts
    H = num_heads
    if dispatch_mask is None:
        dispatch_mask = jnp.ones((B, N, E), x.dtype)

    # Faithful to the reference module: head_dim = dim // num_experts * num_heads.
    head_dim = C // E * H
    assert head_dim % H == 0, "head_dim should be divisible by num_heads"
    # The module's reshape (B,N,3,H,head_dim) of a 3C-wide tensor is only
    # consistent when H * head_dim == C (i.e. num_heads**2 == num_experts).
    assert H * head_dim == C, "num_heads**2 must equal num_experts for this layout"
    scale = head_dim ** (-0.5)

    # ---- Host-side repacking (free): fuse the E per-expert matmuls into single
    # full-width MXU matmuls; fold the attention scale into the q columns
    # (first C of 3C) BEFORE the bf16 cast; feed the MXU bf16 weights.
    col_scale = jnp.where(jnp.arange(3 * C) < C, scale, 1.0).astype(jnp.float32)
    w_qkv_cat = (jnp.transpose(w_qkv, (1, 0, 2)).reshape(C, 3 * C)
                 * col_scale[None, :]).astype(jnp.bfloat16)        # (C, 3C)
    w_proj_flat = w_proj.reshape(C, C).astype(jnp.bfloat16)        # (C, C)

    # 0/1 selector matrices expanding per-expert gates to full column width inside
    # the kernel with one tiny bf16 MXU matmul each (exact for 0/1 entries).
    ke3 = 3 * C // E
    ce = C // E
    sel_qkv = (jnp.arange(3 * C)[None, :] // ke3
               == jnp.arange(E)[:, None]).astype(jnp.bfloat16)     # (E, 3C)
    sel_c = (jnp.arange(C)[None, :] // ce
             == jnp.arange(E)[:, None]).astype(jnp.float32)        # (E, C)
    # Fuse combine-gate selector and per-expert proj bias into one operand.
    sel_cb = jnp.concatenate(
        [sel_c, b_proj.reshape(E, C).astype(jnp.float32)], axis=1
    ).astype(jnp.bfloat16)                                          # (E, 2C)

    kernel = functools.partial(_experts_attention_kernel, num_heads=H)

    # TODO(synk): for v7x (2 TensorCores) and large N, add a second "parallel"
    # grid axis over query-token tiles so both cores share each batch element.
    # TODO(synk): mark grid-invariant weight operands single-buffered
    # (pipeline_mode=pl.Buffered(1)) once supported/verified on the target jax
    # build; the constant index_map makes the double buffer pure VMEM waste.
    return pl.pallas_call(
        kernel,
        out_shape=jax.ShapeDtypeStruct((B, N, C), x.dtype),
        grid_spec=pltpu.PrefetchScalarGridSpec(
            num_scalar_prefetch=0,
            grid=(B,),
            in_specs=[
                pl.BlockSpec((1, N, C), lambda b: (b, 0, 0)),      # x
                pl.BlockSpec((1, N, E), lambda b: (b, 0, 0)),      # dispatch_mask
                pl.BlockSpec((1, N, E), lambda b: (b, 0, 0)),      # combine_array
                pl.BlockSpec((E, 3 * C), lambda b: (0, 0)),        # qkv gate selector (bf16)
                pl.BlockSpec((E, 2 * C), lambda b: (0, 0)),        # [combine selector | bias] (bf16)
                pl.BlockSpec((C, 3 * C), lambda b: (0, 0)),        # fused qkv weights (bf16, scale folded)
                pl.BlockSpec((C, C), lambda b: (0, 0)),            # fused proj weights (bf16)
            ],
            out_specs=pl.BlockSpec((1, N, C), lambda b: (b, 0, 0)),
            scratch_shapes=[pltpu.VMEM((N, C), jnp.float32)],      # per-head output accumulator
        ),
        compiler_params=pltpu.CompilerParams(
            dimension_semantics=("parallel",),
            vmem_limit_bytes=_pick_vmem_limit(),
        ),
    )(x, dispatch_mask, combine_array, sel_qkv, sel_cb, w_qkv_cat, w_proj_flat)


# ----------------------------------------------------------------------------
# Pure-JAX f32 reference mirroring the PyTorch forward (for correctness check).
# ----------------------------------------------------------------------------
def reference(x, combine_array, dispatch_mask, w_qkv, w_proj, b_proj,
              *, num_heads, num_experts):
    B, N, C = x.shape
    E, H = num_experts, num_heads
    head_dim = C // E * H
    scale = head_dim ** (-0.5)
    if dispatch_mask is None:
        dispatch_mask = jnp.ones((B, N, E), x.dtype)

    # ExpertsChooseContract
    y = jnp.einsum("bnc,eck->bnek", x, w_qkv) * dispatch_mask[..., None]
    qkv = y.reshape(B, N, 3 * C)
    qkv = qkv.reshape(B, N, 3, H, head_dim).transpose(2, 0, 3, 1, 4)
    q, k, v = qkv[0], qkv[1], qkv[2]                       # (B, H, N, head_dim)

    attn = jax.nn.softmax(jnp.einsum("bhqd,bhkd->bhqk", q, k) * scale, axis=-1)
    out = jnp.einsum("bhqk,bhkd->bhqd", attn, v)
    out = out.transpose(0, 2, 1, 3).reshape(B, N, E, C // E)

    # ExpertsChooseExpand
    out = jnp.einsum("bnek,ekc->bnec", out, w_proj) + b_proj.reshape(1, 1, E, C)
    out = jnp.sum(out * combine_array[..., None], axis=2)
    return out


if __name__ == "__main__":
    # Small, module-consistent shapes.
    B, N, C = 2, 8, 32
    num_heads, num_experts = 2, 4
    E = num_experts

    key = jax.random.PRNGKey(0)
    kx, kd, kc, kw1, kw2, kb = jax.random.split(key, 6)

    x = jax.random.normal(kx, (B, N, C), dtype=jnp.float32)
    # Expert-choice style routing arrays (synthetic, deterministic).
    dispatch_mask = (jax.random.uniform(kd, (B, N, E)) > 0.5).astype(jnp.float32)
    combine_array = jax.nn.softmax(jax.random.normal(kc, (B, N, E)), axis=-1)

    # Deterministic parameter init (synthetic weights, no checkpoint).
    w_qkv = 0.02 * jax.random.normal(kw1, (E, C, 3 * C // E), dtype=jnp.float32)
    w_proj = 0.02 * jax.random.normal(kw2, (E, C // E, C), dtype=jnp.float32)
    b_proj = 0.02 * jax.random.normal(kb, (E, 1, C), dtype=jnp.float32)

    out = experts_choose_attention(
        x, combine_array, dispatch_mask, w_qkv, w_proj, b_proj,
        num_heads=num_heads, num_experts=num_experts,
    )
    out = jax.block_until_ready(out)

    ref = reference(
        x, combine_array, dispatch_mask, w_qkv, w_proj, b_proj,
        num_heads=num_heads, num_experts=num_experts,
    )
    # bf16 MXU operands (f32 accumulation) + approx reciprocal vs. pure-f32
    # reference => loosened tolerance.
    np.testing.assert_allclose(np.asarray(out), np.asarray(ref), rtol=2e-2, atol=2e-2)

    print("KERNEL_OK")
</pallas_src>

<mosaic_0001>
module attributes {stable_mosaic.version = 11 : i64} {
  func.func @_experts_attention_kernel(%arg0: i32, %arg1: memref<1x8x32xf32, #tpu.memory_space<vmem>>, %arg2: memref<1x8x4xf32, #tpu.memory_space<vmem>>, %arg3: memref<1x8x4xf32, #tpu.memory_space<vmem>>, %arg4: memref<4x96xbf16, #tpu.memory_space<vmem>>, %arg5: memref<4x64xbf16, #tpu.memory_space<vmem>>, %arg6: memref<32x96xbf16, #tpu.memory_space<vmem>>, %arg7: memref<32x32xbf16, #tpu.memory_space<vmem>>, %arg8: memref<1x8x32xf32, #tpu.memory_space<vmem>>, %arg9: memref<8x32xf32, #tpu.memory_space<vmem>>) attributes {dimension_semantics = [#tpu.dimension_semantics<parallel>], iteration_bounds = array<i64: 2>, scalar_prefetch = 0 : i64, scratch_operands = 1 : i64, tpu.core_type = #tpu.core_type<tc>, window_params = [{transform_indices = @transform_0, window_bounds = array<i64: 1, 8, 32>}, {transform_indices = @transform_1, window_bounds = array<i64: 1, 8, 4>}, {transform_indices = @transform_2, window_bounds = array<i64: 1, 8, 4>}, {pipeline_mode = #tpu.pipeline_mode<synchronous>, transform_indices = @transform_3, window_bounds = array<i64: 4, 96>}, {pipeline_mode = #tpu.pipeline_mode<synchronous>, transform_indices = @transform_4, window_bounds = array<i64: 4, 64>}, {pipeline_mode = #tpu.pipeline_mode<synchronous>, transform_indices = @transform_5, window_bounds = array<i64: 32, 96>}, {pipeline_mode = #tpu.pipeline_mode<synchronous>, transform_indices = @transform_6, window_bounds = array<i64: 32, 32>}, {transform_indices = @transform_7, window_bounds = array<i64: 1, 8, 32>}]} {
    %c0 = arith.constant 0 : index
    %c0_0 = arith.constant 0 : index
    %c0_1 = arith.constant 0 : index
    %0 = vector.load %arg1[%c0, %c0_0, %c0_1] : memref<1x8x32xf32, #tpu.memory_space<vmem>>, vector<1x8x32xf32>
    %1 = vector.shape_cast %0 : vector<1x8x32xf32> to vector<8x32xf32>
    %c0_2 = arith.constant 0 : index
    %c0_3 = arith.constant 0 : index
    %c0_4 = arith.constant 0 : index
    %2 = vector.load %arg2[%c0_2, %c0_3, %c0_4] : memref<1x8x4xf32, #tpu.memory_space<vmem>>, vector<1x8x4xf32>
    %3 = vector.shape_cast %2 : vector<1x8x4xf32> to vector<8x4xf32>
    %4 = arith.truncf %3 : vector<8x4xf32> to vector<8x4xbf16>
    %c0_5 = arith.constant 0 : index
    %c0_6 = arith.constant 0 : index
    %c0_7 = arith.constant 0 : index
    %5 = vector.load %arg3[%c0_5, %c0_6, %c0_7] : memref<1x8x4xf32, #tpu.memory_space<vmem>>, vector<1x8x4xf32>
    %6 = vector.shape_cast %5 : vector<1x8x4xf32> to vector<8x4xf32>
    %7 = arith.truncf %6 : vector<8x4xf32> to vector<8x4xbf16>
    %8 = arith.truncf %1 : vector<8x32xf32> to vector<8x32xbf16>
    %c0_8 = arith.constant 0 : index
    %c0_9 = arith.constant 0 : index
    %9 = vector.load %arg6[%c0_8, %c0_9] : memref<32x96xbf16, #tpu.memory_space<vmem>>, vector<32x96xbf16>
    %cst = arith.constant dense<0.000000e+00> : vector<8x96xf32>
    %10 = tpu.matmul %8, %9, %cst {dimension_numbers = #tpu.dot_dimension_numbers<[1], [0], [0], [1], [0, 0, 1, 1], [], []>} : vector<8x32xbf16>, vector<32x96xbf16>, vector<8x96xf32> -> vector<8x96xf32>
    %c0_10 = arith.constant 0 : index
    %c0_11 = arith.constant 0 : index
    %11 = vector.load %arg4[%c0_10, %c0_11] : memref<4x96xbf16, #tpu.memory_space<vmem>>, vector<4x96xbf16>
    %cst_12 = arith.constant dense<0.000000e+00> : vector<8x96xf32>
    %12 = tpu.matmul %4, %11, %cst_12 {dimension_numbers = #tpu.dot_dimension_numbers<[1], [0], [0], [1], [0, 0, 1, 1], [], []>} : vector<8x4xbf16>, vector<4x96xbf16>, vector<8x96xf32> -> vector<8x96xf32>
    %13 = arith.mulf %10, %12 : vector<8x96xf32>
    %14 = arith.truncf %13 : vector<8x96xf32> to vector<8x96xbf16>
    %15 = vector.extract_strided_slice %14 {offsets = [0, 0], sizes = [8, 16], strides = [1, 1]} : vector<8x96xbf16> to vector<8x16xbf16>
    %16 = vector.extract_strided_slice %14 {offsets = [0, 32], sizes = [8, 16], strides = [1, 1]} : vector<8x96xbf16> to vector<8x16xbf16>
    %17 = vector.extract_strided_slice %14 {offsets = [0, 64], sizes = [8, 16], strides = [1, 1]} : vector<8x96xbf16> to vector<8x16xbf16>
    %cst_13 = arith.constant dense<0.000000e+00> : vector<8x8xf32>
    %18 = tpu.matmul %15, %16, %cst_13 {dimension_numbers = #tpu.dot_dimension_numbers<[1], [1], [0], [0], [0, 0, 1, 0], [], []>} : vector<8x16xbf16>, vector<8x16xbf16>, vector<8x8xf32> -> vector<8x8xf32>
    %cst_14 = arith.constant dense<0xFF800000> : vector<8xf32>
    %19 = vector.multi_reduction <maximumf>, %18, %cst_14 [1] : vector<8x8xf32> to vector<8xf32>
    %20 = vector.shape_cast %19 : vector<8xf32> to vector<8x1xf32>
    %21 = vector.broadcast %20 : vector<8x1xf32> to vector<8x8xf32>
    %22 = arith.subf %18, %21 : vector<8x8xf32>
    %23 = math.exp %22 : vector<8x8xf32>
    %cst_15 = arith.constant dense<0.000000e+00> : vector<8xf32>
    %24 = vector.multi_reduction <add>, %23, %cst_15 [1] : vector<8x8xf32> to vector<8xf32>
    %25 = vector.shape_cast %24 : vector<8xf32> to vector<8x1xf32>
    %26 = arith.truncf %23 : vector<8x8xf32> to vector<8x8xbf16>
    %cst_16 = arith.constant dense<0.000000e+00> : vector<8x16xf32>
    %27 = tpu.matmul %26, %17, %cst_16 {dimension_numbers = #tpu.dot_dimension_numbers<[1], [0], [0], [1], [0, 0, 1, 1], [], []>} : vector<8x8xbf16>, vector<8x16xbf16>, vector<8x16xf32> -> vector<8x16xf32>
    %28 = tpu.reciprocal %25 {approx = true} : vector<8x1xf32> -> vector<8x1xf32>
    %29 = vector.broadcast %28 : vector<8x1xf32> to vector<8x16xf32>
    %30 = arith.mulf %27, %29 : vector<8x16xf32>
    %c0_17 = arith.constant 0 : index
    %c0_18 = arith.constant 0 : index
    %31 = vector.load %arg9[%c0_17, %c0_18] : memref<8x32xf32, #tpu.memory_space<vmem>>, vector<8x16xf32>
    tpu.vector_store %arg9[%c0_17, %c0_18], %30 {strides = array<i32>} : memref<8x32xf32, #tpu.memory_space<vmem>>, vector<8x16xf32>,
    %32 = vector.extract_strided_slice %14 {offsets = [0, 16], sizes = [8, 16], strides = [1, 1]} : vector<8x96xbf16> to vector<8x16xbf16>
    %33 = vector.extract_strided_slice %14 {offsets = [0, 48], sizes = [8, 16], strides = [1, 1]} : vector<8x96xbf16> to vector<8x16xbf16>
    %34 = vector.extract_strided_slice %14 {offsets = [0, 80], sizes = [8, 16], strides = [1, 1]} : vector<8x96xbf16> to vector<8x16xbf16>
    %cst_19 = arith.constant dense<0.000000e+00> : vector<8x8xf32>
    %35 = tpu.matmul %32, %33, %cst_19 {dimension_numbers = #tpu.dot_dimension_numbers<[1], [1], [0], [0], [0, 0, 1, 0], [], []>} : vector<8x16xbf16>, vector<8x16xbf16>, vector<8x8xf32> -> vector<8x8xf32>
    %cst_20 = arith.constant dense<0xFF800000> : vector<8xf32>
    %36 = vector.multi_reduction <maximumf>, %35, %cst_20 [1] : vector<8x8xf32> to vector<8xf32>
    %37 = vector.shape_cast %36 : vector<8xf32> to vector<8x1xf32>
    %38 = vector.broadcast %37 : vector<8x1xf32> to vector<8x8xf32>
    %39 = arith.subf %35, %38 : vector<8x8xf32>
    %40 = math.exp %39 : vector<8x8xf32>
    %cst_21 = arith.constant dense<0.000000e+00> : vector<8xf32>
    %41 = vector.multi_reduction <add>, %40, %cst_21 [1] : vector<8x8xf32> to vector<8xf32>
    %42 = vector.shape_cast %41 : vector<8xf32> to vector<8x1xf32>
    %43 = arith.truncf %40 : vector<8x8xf32> to vector<8x8xbf16>
    %cst_22 = arith.constant dense<0.000000e+00> : vector<8x16xf32>
    %44 = tpu.matmul %43, %34, %cst_22 {dimension_numbers = #tpu.dot_dimension_numbers<[1], [0], [0], [1], [0, 0, 1, 1], [], []>} : vector<8x8xbf16>, vector<8x16xbf16>, vector<8x16xf32> -> vector<8x16xf32>
    %45 = tpu.reciprocal %42 {approx = true} : vector<8x1xf32> -> vector<8x1xf32>
    %46 = vector.broadcast %45 : vector<8x1xf32> to vector<8x16xf32>
    %47 = arith.mulf %44, %46 : vector<8x16xf32>
    %c0_23 = arith.constant 0 : index
    %c16 = arith.constant 16 : index
    %48 = vector.load %arg9[%c0_23, %c16] : memref<8x32xf32, #tpu.memory_space<vmem>>, vector<8x16xf32>
    tpu.vector_store %arg9[%c0_23, %c16], %47 {strides = array<i32>} : memref<8x32xf32, #tpu.memory_space<vmem>>, vector<8x16xf32>,
    %c0_24 = arith.constant 0 : index
    %c0_25 = arith.constant 0 : index
    %49 = vector.load %arg5[%c0_24, %c0_25] : memref<4x64xbf16, #tpu.memory_space<vmem>>, vector<4x64xbf16>
    %cst_26 = arith.constant dense<0.000000e+00> : vector<8x64xf32>
    %50 = tpu.matmul %7, %49, %cst_26 {dimension_numbers = #tpu.dot_dimension_numbers<[1], [0], [0], [1], [0, 0, 1, 1], [], []>} : vector<8x4xbf16>, vector<4x64xbf16>, vector<8x64xf32> -> vector<8x64xf32>
    %51 = vector.extract_strided_slice %50 {offsets = [0, 0], sizes = [8, 32], strides = [1, 1]} : vector<8x64xf32> to vector<8x32xf32>
    %52 = vector.extract_strided_slice %50 {offsets = [0, 32], sizes = [8, 32], strides = [1, 1]} : vector<8x64xf32> to vector<8x32xf32>
    %c0_27 = arith.constant 0 : index
    %c0_28 = arith.constant 0 : index
    %53 = vector.load %arg9[%c0_27, %c0_28] : memref<8x32xf32, #tpu.memory_space<vmem>>, vector<8x32xf32>
    %54 = arith.mulf %53, %51 : vector<8x32xf32>
    %55 = arith.truncf %54 : vector<8x32xf32> to vector<8x32xbf16>
    %c0_29 = arith.constant 0 : index
    %c0_30 = arith.constant 0 : index
    %56 = vector.load %arg7[%c0_29, %c0_30] : memref<32x32xbf16, #tpu.memory_space<vmem>>, vector<32x32xbf16>
    %cst_31 = arith.constant dense<0.000000e+00> : vector<8x32xf32>
    %57 = tpu.matmul %55, %56, %cst_31 {dimension_numbers = #tpu.dot_dimension_numbers<[1], [0], [0], [1], [0, 0, 1, 1], [], []>} : vector<8x32xbf16>, vector<32x32xbf16>, vector<8x32xf32> -> vector<8x32xf32>
    %58 = arith.addf %57, %52 : vector<8x32xf32>
    %c0_32 = arith.constant 0 : index
    %c0_33 = arith.constant 0 : index
    %c0_34 = arith.constant 0 : index
    %59 = vector.load %arg8[%c0_32, %c0_33, %c0_34] : memref<1x8x32xf32, #tpu.memory_space<vmem>>, vector<1x8x32xf32>
    %60 = vector.shape_cast %59 : vector<1x8x32xf32> to vector<8x32xf32>
    %61 = vector.shape_cast %58 : vector<8x32xf32> to vector<1x8x32xf32>
    tpu.vector_store %arg8[%c0_32, %c0_33, %c0_34], %61 {strides = array<i32>} : memref<1x8x32xf32, #tpu.memory_space<vmem>>, vector<1x8x32xf32>,
    return
  }
  func.func @transform_0(%arg0: i32) -> (i32, i32, i32) {
    %c0_i32 = arith.constant 0 : i32
    %c0_i32_0 = arith.constant 0 : i32
    %c0_i32_1 = arith.constant 0 : i32
    return %arg0, %c0_i32, %c0_i32_0 : i32, i32, i32
  }
  func.func @transform_1(%arg0: i32) -> (i32, i32, i32) {
    %c0_i32 = arith.constant 0 : i32
    %c0_i32_0 = arith.constant 0 : i32
    %c0_i32_1 = arith.constant 0 : i32
    return %arg0, %c0_i32, %c0_i32_0 : i32, i32, i32
  }
  func.func @transform_2(%arg0: i32) -> (i32, i32, i32) {
    %c0_i32 = arith.constant 0 : i32
    %c0_i32_0 = arith.constant 0 : i32
    %c0_i32_1 = arith.constant 0 : i32
    return %arg0, %c0_i32, %c0_i32_0 : i32, i32, i32
  }
  func.func @transform_3(%arg0: i32) -> (i32, i32) {
    %c0_i32 = arith.constant 0 : i32
    %c0_i32_0 = arith.constant 0 : i32
    %c0_i32_1 = arith.constant 0 : i32
    return %c0_i32, %c0_i32_0 : i32, i32
  }
  func.func @transform_4(%arg0: i32) -> (i32, i32) {
    %c0_i32 = arith.constant 0 : i32
    %c0_i32_0 = arith.constant 0 : i32
    %c0_i32_1 = arith.constant 0 : i32
    return %c0_i32, %c0_i32_0 : i32, i32
  }
  func.func @transform_5(%arg0: i32) -> (i32, i32) {
    %c0_i32 = arith.constant 0 : i32
    %c0_i32_0 = arith.constant 0 : i32
    %c0_i32_1 = arith.constant 0 : i32
    return %c0_i32, %c0_i32_0 : i32, i32
  }
  func.func @transform_6(%arg0: i32) -> (i32, i32) {
    %c0_i32 = arith.constant 0 : i32
    %c0_i32_0 = arith.constant 0 : i32
    %c0_i32_1 = arith.constant 0 : i32
    return %c0_i32, %c0_i32_0 : i32, i32
  }
  func.func @transform_7(%arg0: i32) -> (i32, i32, i32) {
    %c0_i32 = arith.constant 0 : i32
    %c0_i32_0 = arith.constant 0 : i32
    %c0_i32_1 = arith.constant 0 : i32
    return %arg0, %c0_i32, %c0_i32_0 : i32, i32, i32
  }
}

</mosaic_0001>

<llo_original>
// kernel: tpu_custom_call.1
$region0: #{tpu_custom_call.1}
  #allocation0 [shape = 'u32[]', space=smem, size = 0x4, offset = 0x4, fixed_abs, tag = 'smem constant byte address 0x4 - core index']
  #allocation1 [shape = 'u32[144,128]{1,0:T(1,128)}', space=vmem, size = 0x12000, scoped, tag = 'internal scratch']
  #allocation2 [shape = 'f32[8,32]{1,0:T(8,128)}', space=vmem, size = 0x1000, scoped, tag = 'scratch operand']
  %s0 = inlined_call_operand.vmem [shape: f32[2,8,32], index: 0, kind: input, shape index: {}]
  %s1 = inlined_call_operand.vmem [shape: f32[2,8,4], index: 1, kind: input, shape index: {}]
  %s2 = inlined_call_operand.vmem [shape: f32[2,8,4], index: 2, kind: input, shape index: {}]
  %s3 = inlined_call_operand.vmem [shape: bf16[4,96], index: 3, kind: input, shape index: {}]
  %s4 = inlined_call_operand.vmem [shape: bf16[4,64], index: 4, kind: input, shape index: {}]
  %s5 = inlined_call_operand.vmem [shape: bf16[32,96], index: 5, kind: input, shape index: {}]
  %s6 = inlined_call_operand.vmem [shape: bf16[32,32], index: 6, kind: input, shape index: {}]
  %s7 = inlined_call_operand.hbm [shape: f32[2,8,32], index: 7, kind: output, shape index: {}]
  %s8 = sld [smem:[#allocation0]]
  $region61: #{tpu_custom_call.1} parent=0
    _
  %s10 = ssub.s32 1, %s8
  %s11 = scalar_select 0, %s10, %s8
  $region1: #{tpu_custom_call.1} parent=0
    #allocation3 [shape = 'u8[8192]{0}', space=vmem, size = 0x2000, scoped, tag = 'output window, operand 0']
    #allocation4 [shape = 's32[2]{0}', space=sflag, size = 0x8, scoped, tag = 'scoped memory for tpu_custom_call.1']
    %12 = vsyncpa [#allocation4], 0
    %s13 = scalar_lea.sflag [#allocation4], 1
    %14 = vsyncpa %s13, 0
    loop: start=0, step=1, limit=4
    $region2: #{tpu_custom_call.1} parent=1 // loop_pre_header
      _
    $region3: #{tpu_custom_call.1} parent=1 // loop_header
      %s16 = sphi 0, %s20
      %p17 = scmp.ge.s32.totalorder %s16, 4
      %s26 = sphi 0, %s28
      %s29 = sphi 0, %s26
      %s30 = sphi 0, %s29
      %s46 = sphi 0, %s30
      %s52 = sphi 0, %s54
      %s55 = sphi 0, %s52
      %s56 = sphi 0, %s55
      %s72 = sphi 0, %s56
      %s78 = sphi 0, %s80
      %s81 = sphi 0, %s78
      %s82 = sphi 0, %s81
      %s98 = sphi 0, %s82
      %s102 = sphi 0, %s102
      %s104 = sphi 0, %s102
      %s105 = sphi 0, %s104
      %s119 = sphi 0, %s105
      %s123 = sphi 0, %s123
      %s125 = sphi 0, %s123
      %s126 = sphi 0, %s125
      %s140 = sphi 0, %s126
      %s144 = sphi 0, %s144
      %s146 = sphi 0, %s144
      %s147 = sphi 0, %s146
      %s161 = sphi 0, %s147
      %s165 = sphi 0, %s165
      %s167 = sphi 0, %s165
      %s168 = sphi 0, %s167
      %s182 = sphi 0, %s168
      %s188 = sphi 0, %s190
      %s191 = sphi 0, %s188
      %s192 = sphi 0, %s191
      %s208 = sphi 0, %s192
    $region4: #{tpu_custom_call.1} parent=1 // loop_header_branch
      %19 = sbr.rel (%p17) target = $region8
    $region5: #{tpu_custom_call.1} parent=1 // loop_body
      %s21 = ssub.s32 %s16, 1
      %s22 = ssub.s32 %s16, 2
      %s23 = sadd.s32 %s16, 1
      %s24 = ssub.s32 %s16, %s23
      %p25 = scmp.eq.s32.totalorder %s24, 0
      %s27 = sadd.s32 %s26, 1
      %s28 = scalar_select %p25, %s26, %s27
      %p31 = pneg %p25
      %p32 = scmp.eq.s32.totalorder %s16, 1
      %p33 = por %p31, %p32
      %p34 = scmp.ne.s32.totalorder %s26, %s29
      %p35 = scmp.eq.s32.totalorder %s16, 0
      %p36 = por %p34, %p35
      %p37 = scmp.ne.s32.totalorder %s26, %s29
      %p38 = scmp.eq.s32.totalorder %s21, 1
      %p39 = por %p37, %p38
      %p40 = scmp.ne.s32.totalorder %s29, %s30
      %p41 = scmp.eq.s32.totalorder %s21, 0
      %p42 = por %p40, %p41
      %p43 = scmp.ne.s32.totalorder %s29, %s30
      %p44 = scmp.eq.s32.totalorder %s22, 1
      %p45 = por %p43, %p44
      %p47 = scmp.ne.s32.totalorder %s30, %s46
      %p48 = scmp.eq.s32.totalorder %s22, 0
      %p49 = por %p47, %p48
      %s50 = ssub.s32 %s16, %s23
      %p51 = scmp.eq.s32.totalorder %s50, 0
      %s53 = sadd.s32 %s52, 1
      %s54 = scalar_select %p51, %s52, %s53
      %p57 = pneg %p51
      %p58 = scmp.eq.s32.totalorder %s16, 1
      %p59 = por %p57, %p58
      %p60 = scmp.ne.s32.totalorder %s52, %s55
      %p61 = scmp.eq.s32.totalorder %s16, 0
      %p62 = por %p60, %p61
      %p63 = scmp.ne.s32.totalorder %s52, %s55
      %p64 = scmp.eq.s32.totalorder %s21, 1
      %p65 = por %p63, %p64
      %p66 = scmp.ne.s32.totalorder %s55, %s56
      %p67 = scmp.eq.s32.totalorder %s21, 0
      %p68 = por %p66, %p67
      %p69 = scmp.ne.s32.totalorder %s55, %s56
      %p70 = scmp.eq.s32.totalorder %s22, 1
      %p71 = por %p69, %p70
      %p73 = scmp.ne.s32.totalorder %s56, %s72
      %p74 = scmp.eq.s32.totalorder %s22, 0
      %p75 = por %p73, %p74
      %s76 = ssub.s32 %s16, %s23
      %p77 = scmp.eq.s32.totalorder %s76, 0
      %s79 = sadd.s32 %s78, 1
      %s80 = scalar_select %p77, %s78, %s79
      %p83 = pneg %p77
      %p84 = scmp.eq.s32.totalorder %s16, 1
      %p85 = por %p83, %p84
      %p86 = scmp.ne.s32.totalorder %s78, %s81
      %p87 = scmp.eq.s32.totalorder %s16, 0
      %p88 = por %p86, %p87
      %p89 = scmp.ne.s32.totalorder %s78, %s81
      %p90 = scmp.eq.s32.totalorder %s21, 1
      %p91 = por %p89, %p90
      %p92 = scmp.ne.s32.totalorder %s81, %s82
      %p93 = scmp.eq.s32.totalorder %s21, 0
      %p94 = por %p92, %p93
      %p95 = scmp.ne.s32.totalorder %s81, %s82
      %p96 = scmp.eq.s32.totalorder %s22, 1
      %p97 = por %p95, %p96
      %p99 = scmp.ne.s32.totalorder %s82, %s98
      %p100 = scmp.eq.s32.totalorder %s22, 0
      %p101 = por %p99, %p100
      %s103 = sadd.s32 %s102, 1
      %p106 = scmp.eq.s32.totalorder %s16, 1
      %p107 = scmp.ne.s32.totalorder %s102, %s104
      %p108 = scmp.eq.s32.totalorder %s16, 0
      %p109 = por %p107, %p108
      %p110 = scmp.ne.s32.totalorder %s102, %s104
      %p111 = scmp.eq.s32.totalorder %s21, 1
      %p112 = por %p110, %p111
      %p113 = scmp.ne.s32.totalorder %s104, %s105
      %p114 = scmp.eq.s32.totalorder %s21, 0
      %p115 = por %p113, %p114
      %p116 = scmp.ne.s32.totalorder %s104, %s105
      %p117 = scmp.eq.s32.totalorder %s22, 1
      %p118 = por %p116, %p117
      %p120 = scmp.ne.s32.totalorder %s105, %s119
      %p121 = scmp.eq.s32.totalorder %s22, 0
      %p122 = por %p120, %p121
      %s124 = sadd.s32 %s123, 1
      %p127 = scmp.eq.s32.totalorder %s16, 1
      %p128 = scmp.ne.s32.totalorder %s123, %s125
      %p129 = scmp.eq.s32.totalorder %s16, 0
      %p130 = por %p128, %p129
      %p131 = scmp.ne.s32.totalorder %s123, %s125
      %p132 = scmp.eq.s32.totalorder %s21, 1
      %p133 = por %p131, %p132
      %p134 = scmp.ne.s32.totalorder %s125, %s126
      %p135 = scmp.eq.s32.totalorder %s21, 0
      %p136 = por %p134, %p135
      %p137 = scmp.ne.s32.totalorder %s125, %s126
      %p138 = scmp.eq.s32.totalorder %s22, 1
      %p139 = por %p137, %p138
      %p141 = scmp.ne.s32.totalorder %s126, %s140
      %p142 = scmp.eq.s32.totalorder %s22, 0
      %p143 = por %p141, %p142
      %s145 = sadd.s32 %s144, 1
      %p148 = scmp.eq.s32.totalorder %s16, 1
      %p149 = scmp.ne.s32.totalorder %s144, %s146
      %p150 = scmp.eq.s32.totalorder %s16, 0
      %p151 = por %p149, %p150
      %p152 = scmp.ne.s32.totalorder %s144, %s146
      %p153 = scmp.eq.s32.totalorder %s21, 1
      %p154 = por %p152, %p153
      %p155 = scmp.ne.s32.totalorder %s146, %s147
      %p156 = scmp.eq.s32.totalorder %s21, 0
      %p157 = por %p155, %p156
      %p158 = scmp.ne.s32.totalorder %s146, %s147
      %p159 = scmp.eq.s32.totalorder %s22, 1
      %p160 = por %p158, %p159
      %p162 = scmp.ne.s32.totalorder %s147, %s161
      %p163 = scmp.eq.s32.totalorder %s22, 0
      %p164 = por %p162, %p163
      %s166 = sadd.s32 %s165, 1
      %p169 = scmp.eq.s32.totalorder %s16, 1
      %p170 = scmp.ne.s32.totalorder %s165, %s167
      %p171 = scmp.eq.s32.totalorder %s16, 0
      %p172 = por %p170, %p171
      %p173 = scmp.ne.s32.totalorder %s165, %s167
      %p174 = scmp.eq.s32.totalorder %s21, 1
      %p175 = por %p173, %p174
      %p176 = scmp.ne.s32.totalorder %s167, %s168
      %p177 = scmp.eq.s32.totalorder %s21, 0
      %p178 = por %p176, %p177
      %p179 = scmp.ne.s32.totalorder %s167, %s168
      %p180 = scmp.eq.s32.totalorder %s22, 1
      %p181 = por %p179, %p180
      %p183 = scmp.ne.s32.totalorder %s168, %s182
      %p184 = scmp.eq.s32.totalorder %s22, 0
      %p185 = por %p183, %p184
      %s186 = ssub.s32 %s16, %s23
      %p187 = scmp.eq.s32.totalorder %s186, 0
      %s189 = sadd.s32 %s188, 1
      %s190 = scalar_select %p187, %s188, %s189
      %p193 = pneg %p187
      %p194 = scmp.eq.s32.totalorder %s16, 1
      %p195 = por %p193, %p194
      %p196 = scmp.ne.s32.totalorder %s188, %s191
      %p197 = scmp.eq.s32.totalorder %s16, 0
      %p198 = por %p196, %p197
      %p199 = scmp.ne.s32.totalorder %s188, %s191
      %p200 = scmp.eq.s32.totalorder %s21, 1
      %p201 = por %p199, %p200
      %p202 = scmp.ne.s32.totalorder %s191, %s192
      %p203 = scmp.eq.s32.totalorder %s21, 0
      %p204 = por %p202, %p203
      %p205 = scmp.ne.s32.totalorder %s191, %s192
      %p206 = scmp.eq.s32.totalorder %s22, 1
      %p207 = por %p205, %p206
      %p209 = scmp.ne.s32.totalorder %s192, %s208
      %p210 = scmp.eq.s32.totalorder %s22, 0
      %p211 = por %p209, %p210
      %p212 = scmp.le.s32.totalorder 1, %s16
      %p213 = scmp.lt.s32.totalorder %s16, 3
      %p214 = pnand %p212, %p213
      %p215 = pneg %p214
      // Predicated region
      $region9: #{tpu_custom_call.1} parent=5 // pred_check
        _
      $region10: #{tpu_custom_call.1} parent=5 // pred_check_branch
        %217 = sbr.rel (%p214) target = $region12
      $region11: #{tpu_custom_call.1} parent=5 // pred_region
        %s218 = ssub.s32 %s16, 1
        // Predicated region
        $region13: #{tpu_custom_call.1} parent=11 // pred_check
          %p219 = pneg %p115
        $region14: #{tpu_custom_call.1} parent=11 // pred_check_branch
          %221 = sbr.rel (%p219) target = $region16
        $region15: #{tpu_custom_call.1} parent=11 // pred_region
          _
        $region16: #{tpu_custom_call.1} parent=11 // pred_fallthru
          _
        // Predicated region
        $region17: #{tpu_custom_call.1} parent=11 // pred_check
          %p222 = pneg %p136
        $region18: #{tpu_custom_call.1} parent=11 // pred_check_branch
          %224 = sbr.rel (%p222) target = $region20
        $region19: #{tpu_custom_call.1} parent=11 // pred_region
          _
        $region20: #{tpu_custom_call.1} parent=11 // pred_fallthru
          _
        // Predicated region
        $region21: #{tpu_custom_call.1} parent=11 // pred_check
          %p225 = pneg %p157
        $region22: #{tpu_custom_call.1} parent=11 // pred_check_branch
          %227 = sbr.rel (%p225) target = $region24
        $region23: #{tpu_custom_call.1} parent=11 // pred_region
          _
        $region24: #{tpu_custom_call.1} parent=11 // pred_fallthru
          _
        // Predicated region
        $region25: #{tpu_custom_call.1} parent=11 // pred_check
          %p228 = pneg %p178
        $region26: #{tpu_custom_call.1} parent=11 // pred_check_branch
          %230 = sbr.rel (%p228) target = $region28
        $region27: #{tpu_custom_call.1} parent=11 // pred_region
          _
        $region28: #{tpu_custom_call.1} parent=11 // pred_fallthru
          _
      $region12: #{tpu_custom_call.1} parent=5 // pred_fallthru
        _
      %p231 = scmp.lt.s32.totalorder %s16, 2
      // Predicated region
      $region29: #{tpu_custom_call.1} parent=5 // pred_check
        %p232 = pneg %p231
      $region30: #{tpu_custom_call.1} parent=5 // pred_check_branch
        %234 = sbr.rel (%p232) target = $region32
      $region31: #{tpu_custom_call.1} parent=5 // pred_region
        // Predicated region
        $region33: #{tpu_custom_call.1} parent=31 // pred_check
          %p235 = pneg %p36
        $region34: #{tpu_custom_call.1} parent=31 // pred_check_branch
          %237 = sbr.rel (%p235) target = $region36
        $region35: #{tpu_custom_call.1} parent=31 // pred_region
          %p238 = scmp.lt.s32.totalorder %s16, 1
          %s239 = scalar_select %p238, %s16, 1
          %s240 = smul.addr %s239, 8
          %s241 = scalar_lea.vmem %s0, %s240
        $region36: #{tpu_custom_call.1} parent=31 // pred_fallthru
          _
        // Predicated region
        $region37: #{tpu_custom_call.1} parent=31 // pred_check
          %p242 = pneg %p62
        $region38: #{tpu_custom_call.1} parent=31 // pred_check_branch
          %244 = sbr.rel (%p242) target = $region40
        $region39: #{tpu_custom_call.1} parent=31 // pred_region
          %p245 = scmp.lt.s32.totalorder %s16, 1
          %s246 = scalar_select %p245, %s16, 1
          %s247 = smul.addr %s246, 8
          %s248 = scalar_lea.vmem %s1, %s247
        $region40: #{tpu_custom_call.1} parent=31 // pred_fallthru
          _
        // Predicated region
        $region41: #{tpu_custom_call.1} parent=31 // pred_check
          %p249 = pneg %p88
        $region42: #{tpu_custom_call.1} parent=31 // pred_check_branch
          %251 = sbr.rel (%p249) target = $region44
        $region43: #{tpu_custom_call.1} parent=31 // pred_region
          %p252 = scmp.lt.s32.totalorder %s16, 1
          %s253 = scalar_select %p252, %s16, 1
          %s254 = smul.addr %s253, 8
          %s255 = scalar_lea.vmem %s2, %s254
        $region44: #{tpu_custom_call.1} parent=31 // pred_fallthru
          _
      $region32: #{tpu_custom_call.1} parent=5 // pred_fallthru
        _
      %p256 = scmp.le.s32.totalorder 1, %s16
      %p257 = scmp.lt.s32.totalorder %s16, 3
      %p258 = pnand %p256, %p257
      %p259 = pneg %p258
      // Predicated region
      $region45: #{tpu_custom_call.1} parent=5 // pred_check
        _
      $region46: #{tpu_custom_call.1} parent=5 // pred_check_branch
        %261 = sbr.rel (%p258) target = $region48
      $region47: #{tpu_custom_call.1} parent=5 // pred_region
        %s262 = ssub.s32 %s16, 1
        %p263 = scmp.lt.s32.totalorder %s21, 1
        %s264 = scalar_select %p263, %s21, 1
        %s265 = smul.addr %s264, 8
        %s266 = scalar_lea.vmem %s0, %s265
        %p267 = pneg %p42
        %p268 = pneg %p39
        %p269 = scmp.lt.s32.totalorder %s21, 1
        %s270 = scalar_select %p269, %s21, 1
        %s271 = smul.addr %s270, 8
        %s272 = scalar_lea.vmem %s1, %s271
        %p273 = pneg %p68
        %p274 = pneg %p65
        %p275 = scmp.lt.s32.totalorder %s21, 1
        %s276 = scalar_select %p275, %s21, 1
        %s277 = smul.addr %s276, 8
        %s278 = scalar_lea.vmem %s2, %s277
        %p279 = pneg %p94
        %p280 = pneg %p91
        %p281 = pneg %p115
        %p282 = pneg %p112
        %p283 = pneg %p136
        %p284 = pneg %p133
        %p285 = pneg %p157
        %p286 = pneg %p154
        %p287 = pneg %p178
        %p288 = pneg %p175
        %p289 = pneg %p204
        %p290 = pneg %p201
        %s291 = sand.u32 %s191, 1
        %s292 = scalar_lea.sflag [#allocation4], %s291
        %s293 = sand.u32 %s191, 1
        %s294 = smul.addr %s293, 8
        %s295 = scalar_lea.vmem [#allocation3], %s294
        %p296 = scmp.lt.s32.totalorder %s21, 1
        %s297 = scalar_select %p296, %s21, 1
        %s298 = smul.addr %s297, 8
        %s299 = scalar_lea.vmem %s0, %s298
        %p300 = scmp.lt.s32.totalorder %s21, 1
        %s301 = scalar_select %p300, %s21, 1
        %s302 = smul.addr %s301, 8
        %s303 = scalar_lea.vmem %s1, %s302
        %p304 = scmp.lt.s32.totalorder %s21, 1
        %s305 = scalar_select %p304, %s21, 1
        %s306 = smul.addr %s305, 8
        %s307 = scalar_lea.vmem %s2, %s306
        %v309 = vld [vmem:[%s299] sm:$0xff]
        %v310 = vld [vmem:[%s303] sm:$0xff]
        %v311 = vpack.c.bf16 %v310, %v310
        %v312 = vld [vmem:[%s307] sm:$0xff]
        %v313 = vpack.c.bf16 %v312, %v312
        %v314 = vpack.c.bf16 %v309, %v309
        %v315 = vld [vmem:[%s5] sm:$0xf]
        %v316 = vld [vmem:[%s5 + $0x4] sm:$0xf]
        %v317 = vld [vmem:[%s5 + $0x8] sm:$0xf]
        %v318 = vld [vmem:[%s5 + $0xc] sm:$0xf]
        %v323 = vunpack.c.l.b16 %v315
        %v324 = vunpack.c.l.b16 %v316
        %v325 = vunpack.c.l.b16 %v317
        %v326 = vunpack.c.l.b16 %v318
        %v327 = vpack.c.b16 %v324, %v323
        %v328 = vpack.c.b16 %v326, %v325
        %vm331 = vcmask 261120
        %v333 = vsel %vm331, %v314, 0
        %335 = vmatprep.subr.bf16.mxu0 0
        %336 = vmatpush1.bf16.msra.mxu0 %v327
        %337 = vmatprep.subr.bf16.mxu0 0
        %338 = vmatpush1.bf16.msra.mxu0 %v328
        %339 = vmatprep.subr.bf16.mxu0 0
        %340 = vmatpush1.bf16.msra.mxu0 0
        %341 = vmatprep.subr.bf16.mxu0 0
        %342 = vmatpush1.bf16.msra.mxu0 0
        %343 = vmatprep.subr.bf16.mxu0 0
        %344 = vmatpush1.bf16.msra.mxu0 0
        %345 = vmatprep.subr.bf16.mxu0 0
        %346 = vmatpush1.bf16.msra.mxu0 0
        %347 = vmatprep.subr.bf16.mxu0 0
        %348 = vmatpush1.bf16.msra.mxu0 0
        %349 = vmatprep.subr.bf16.mxu0 0
        %350 = vmatpush1.bf16.msra.mxu0 0
        %351 = vmatprep.subr.bf16.mxu0 0
        %352 = vmatpush1.bf16.msra.mxu0 0
        %353 = vmatprep.subr.bf16.mxu0 0
        %354 = vmatpush1.bf16.msra.mxu0 0
        %355 = vmatprep.subr.bf16.mxu0 0
        %356 = vmatpush1.bf16.msra.mxu0 0
        %357 = vmatprep.subr.bf16.mxu0 0
        %358 = vmatpush1.bf16.msra.mxu0 0
        %359 = vmatprep.subr.bf16.mxu0 0
        %360 = vmatpush1.bf16.msra.mxu0 0
        %361 = vmatprep.subr.bf16.mxu0 0
        %362 = vmatpush1.bf16.msra.mxu0 0
        %363 = vmatprep.subr.bf16.mxu0 0
        %364 = vmatpush1.bf16.msra.mxu0 0
        %365 = vmatprep.subr.bf16.mxu0 0
        %366 = vmatpush1.bf16.msra.mxu0 0
        %367 = vmatprep.mubr.bf16.mxu0 0
        %368 = vmatmul.mubr.bf16.gmra.mrb[0].mxu0 %v333
        %v369 = vpop.f32.mrb[0].mxu0
        %v370 = vadd.f32 0.0, %v369
        %v371 = vpop.f32.mrb[0].mxu0
        %v372 = vpop.f32.mrb[0].mxu0
        %v373 = vpop.f32.mrb[0].mxu0
        %374 = vdwg.mxu0
        %v375 = vld [vmem:[%s3] sm:$0x3]
        %vm376 = vcmask 31744
        %v378 = vsel %vm376, %v311, 0
        %vm380 = vcmask 1041408
        %v382 = vsel %vm380, %v375, 0
        %384 = vmatprep.subr.bf16.mxu0 0
        %385 = vmatpush1.bf16.msra.mxu0 %v382
        %386 = vmatprep.subr.bf16.mxu0 0
        %387 = vmatpush1.bf16.msra.mxu0 0
        %388 = vmatprep.subr.bf16.mxu0 0
        %389 = vmatpush1.bf16.msra.mxu0 0
        %390 = vmatprep.subr.bf16.mxu0 0
        %391 = vmatpush1.bf16.msra.mxu0 0
        %392 = vmatprep.subr.bf16.mxu0 0
        %393 = vmatpush1.bf16.msra.mxu0 0
        %394 = vmatprep.subr.bf16.mxu0 0
        %395 = vmatpush1.bf16.msra.mxu0 0
        %396 = vmatprep.subr.bf16.mxu0 0
        %397 = vmatpush1.bf16.msra.mxu0 0
        %398 = vmatprep.subr.bf16.mxu0 0
        %399 = vmatpush1.bf16.msra.mxu0 0
        %400 = vmatprep.subr.bf16.mxu0 0
        %401 = vmatpush1.bf16.msra.mxu0 0
        %402 = vmatprep.subr.bf16.mxu0 0
        %403 = vmatpush1.bf16.msra.mxu0 0
        %404 = vmatprep.subr.bf16.mxu0 0
        %405 = vmatpush1.bf16.msra.mxu0 0
        %406 = vmatprep.subr.bf16.mxu0 0
        %407 = vmatpush1.bf16.msra.mxu0 0
        %408 = vmatprep.subr.bf16.mxu0 0
        %409 = vmatpush1.bf16.msra.mxu0 0
        %410 = vmatprep.subr.bf16.mxu0 0
        %411 = vmatpush1.bf16.msra.mxu0 0
        %412 = vmatprep.subr.bf16.mxu0 0
        %413 = vmatpush1.bf16.msra.mxu0 0
        %414 = vmatprep.subr.bf16.mxu0 0
        %415 = vmatpush1.bf16.msra.mxu0 0
        %416 = vmatprep.mubr.bf16.mxu0 0
        %417 = vmatmul.mubr.bf16.gmra.mrb[0].mxu0 %v378
        %v418 = vpop.f32.mrb[0].mxu0
        %v419 = vadd.f32 0.0, %v418
        %v420 = vpop.f32.mrb[0].mxu0
        %v421 = vpop.f32.mrb[0].mxu0
        %v422 = vpop.f32.mrb[0].mxu0
        %423 = vdwg.mxu0
        %v424 = vmul.f32 %v370, %v419
        %v425 = vpack.c.bf16 %v424, %v424
        %427 = vrot.lane.b32.xlu0 %v425, 96
        %v428 = vpop.permute.xlu0 %427
        %vm429 = vcmask 130048
        %v431 = vsel %vm429, %v425, 0
        %v434 = vsel %vm429, %v428, 0
        %436 = vmatprep.subr.bf16.mxu0 0
        %437 = vmatpush1.bf16.xpose.msra.mxu0 %v434
        %438 = vmatprep.subr.bf16.mxu0 0
        %439 = vmatpush1.bf16.xpose.msra.mxu0 0
        %440 = vmatprep.subr.bf16.mxu0 0
        %441 = vmatpush1.bf16.xpose.msra.mxu0 0
        %442 = vmatprep.subr.bf16.mxu0 0
        %443 = vmatpush1.bf16.xpose.msra.mxu0 0
        %444 = vmatprep.subr.bf16.mxu0 0
        %445 = vmatpush1.bf16.xpose.msra.mxu0 0
        %446 = vmatprep.subr.bf16.mxu0 0
        %447 = vmatpush1.bf16.xpose.msra.mxu0 0
        %448 = vmatprep.subr.bf16.mxu0 0
        %449 = vmatpush1.bf16.xpose.msra.mxu0 0
        %450 = vmatprep.subr.bf16.mxu0 0
        %451 = vmatpush1.bf16.xpose.msra.mxu0 0
        %452 = vmatprep.subr.bf16.mxu0 0
        %453 = vmatpush1.bf16.xpose.msra.mxu0 0
        %454 = vmatprep.subr.bf16.mxu0 0
        %455 = vmatpush1.bf16.xpose.msra.mxu0 0
        %456 = vmatprep.subr.bf16.mxu0 0
        %457 = vmatpush1.bf16.xpose.msra.mxu0 0
        %458 = vmatprep.subr.bf16.mxu0 0
        %459 = vmatpush1.bf16.xpose.msra.mxu0 0
        %460 = vmatprep.subr.bf16.mxu0 0
        %461 = vmatpush1.bf16.xpose.msra.mxu0 0
        %462 = vmatprep.subr.bf16.mxu0 0
        %463 = vmatpush1.bf16.xpose.msra.mxu0 0
        %464 = vmatprep.subr.bf16.mxu0 0
        %465 = vmatpush1.bf16.xpose.msra.mxu0 0
        %466 = vmatprep.subr.bf16.mxu0 0
        %467 = vmatpush1.bf16.xpose.msra.mxu0 0
        %468 = vmatprep.mubr.bf16.mxu0 0
        %469 = vmatmul.mubr.bf16.gmra.mrb[0].mxu0 %v431
        %v470 = vpop.f32.mrb[0].mxu0
        %v471 = vadd.f32 0.0, %v470
        %v472 = vpop.f32.mrb[0].mxu0
        %v473 = vpop.f32.mrb[0].mxu0
        %v474 = vpop.f32.mrb[0].mxu0
        %475 = vdwg.mxu0
        %vm476 = vcmask 64512
        %v477 = vsel %vm476, %v471, -inf
        %478 = vmax.xlane.f32.xlu0 %v477
        %v479 = vpop.xlane.xlu0 %478
        %v480 = vsub.f32 %v471, %v479
        %v481 = vmul.f32 %v480, 1.442695
        %v482 = vpow.pop %v481
        %v483 = vsel %vm476, %v482, 0.0
        %484 = vadd.xlane.f32.xlu0 %v483
        %v485 = vpop.xlane.xlu0 %484
        %v486 = vpack.c.bf16 %v482, %v482
        %487 = vrot.lane.b32.xlu0 %v425, 64
        %v488 = vpop.permute.xlu0 %487
        %v490 = vsel %vm476, %v486, 0
        %vm492 = vcmask 1043456
        %v494 = vsel %vm492, %v488, 0
        %496 = vmatprep.subr.bf16.mxu0 0
        %497 = vmatpush1.bf16.msra.mxu0 %v494
        %498 = vmatprep.subr.bf16.mxu0 0
        %499 = vmatpush1.bf16.msra.mxu0 0
        %500 = vmatprep.subr.bf16.mxu0 0
        %501 = vmatpush1.bf16.msra.mxu0 0
        %502 = vmatprep.subr.bf16.mxu0 0
        %503 = vmatpush1.bf16.msra.mxu0 0
        %504 = vmatprep.subr.bf16.mxu0 0
        %505 = vmatpush1.bf16.msra.mxu0 0
        %506 = vmatprep.subr.bf16.mxu0 0
        %507 = vmatpush1.bf16.msra.mxu0 0
        %508 = vmatprep.subr.bf16.mxu0 0
        %509 = vmatpush1.bf16.msra.mxu0 0
        %510 = vmatprep.subr.bf16.mxu0 0
        %511 = vmatpush1.bf16.msra.mxu0 0
        %512 = vmatprep.subr.bf16.mxu0 0
        %513 = vmatpush1.bf16.msra.mxu0 0
        %514 = vmatprep.subr.bf16.mxu0 0
        %515 = vmatpush1.bf16.msra.mxu0 0
        %516 = vmatprep.subr.bf16.mxu0 0
        %517 = vmatpush1.bf16.msra.mxu0 0
        %518 = vmatprep.subr.bf16.mxu0 0
        %519 = vmatpush1.bf16.msra.mxu0 0
        %520 = vmatprep.subr.bf16.mxu0 0
        %521 = vmatpush1.bf16.msra.mxu0 0
        %522 = vmatprep.subr.bf16.mxu0 0
        %523 = vmatpush1.bf16.msra.mxu0 0
        %524 = vmatprep.subr.bf16.mxu0 0
        %525 = vmatpush1.bf16.msra.mxu0 0
        %526 = vmatprep.subr.bf16.mxu0 0
        %527 = vmatpush1.bf16.msra.mxu0 0
        %528 = vmatprep.mubr.bf16.mxu0 0
        %529 = vmatmul.mubr.bf16.gmra.mrb[0].mxu0 %v490
        %v530 = vpop.f32.mrb[0].mxu0
        %v531 = vadd.f32 0.0, %v530
        %v532 = vpop.f32.mrb[0].mxu0
        %v533 = vpop.f32.mrb[0].mxu0
        %v534 = vpop.f32.mrb[0].mxu0
        %535 = vdwg.mxu0
        %v536 = vrcp.pop %v485
        %v537 = vmul.f32 %v531, %v536
        %538 = vst.msk [vmem:[#allocation2] sm:$0xff] %vm429, %v537
        %539 = vrot.lane.b32.xlu0 %v425, 112
        %v540 = vpop.permute.xlu0 %539
        %541 = vrot.lane.b32.xlu0 %v425, 80
        %v542 = vpop.permute.xlu0 %541
        %v544 = vsel %vm429, %v540, 0
        %v547 = vsel %vm429, %v542, 0
        %549 = vmatprep.subr.bf16.mxu0 0
        %550 = vmatpush1.bf16.xpose.msra.mxu0 %v547
        %551 = vmatprep.subr.bf16.mxu0 0
        %552 = vmatpush1.bf16.xpose.msra.mxu0 0
        %553 = vmatprep.subr.bf16.mxu0 0
        %554 = vmatpush1.bf16.xpose.msra.mxu0 0
        %555 = vmatprep.subr.bf16.mxu0 0
        %556 = vmatpush1.bf16.xpose.msra.mxu0 0
        %557 = vmatprep.subr.bf16.mxu0 0
        %558 = vmatpush1.bf16.xpose.msra.mxu0 0
        %559 = vmatprep.subr.bf16.mxu0 0
        %560 = vmatpush1.bf16.xpose.msra.mxu0 0
        %561 = vmatprep.subr.bf16.mxu0 0
        %562 = vmatpush1.bf16.xpose.msra.mxu0 0
        %563 = vmatprep.subr.bf16.mxu0 0
        %564 = vmatpush1.bf16.xpose.msra.mxu0 0
        %565 = vmatprep.subr.bf16.mxu0 0
        %566 = vmatpush1.bf16.xpose.msra.mxu0 0
        %567 = vmatprep.subr.bf16.mxu0 0
        %568 = vmatpush1.bf16.xpose.msra.mxu0 0
        %569 = vmatprep.subr.bf16.mxu0 0
        %570 = vmatpush1.bf16.xpose.msra.mxu0 0
        %571 = vmatprep.subr.bf16.mxu0 0
        %572 = vmatpush1.bf16.xpose.msra.mxu0 0
        %573 = vmatprep.subr.bf16.mxu0 0
        %574 = vmatpush1.bf16.xpose.msra.mxu0 0
        %575 = vmatprep.subr.bf16.mxu0 0
        %576 = vmatpush1.bf16.xpose.msra.mxu0 0
        %577 = vmatprep.subr.bf16.mxu0 0
        %578 = vmatpush1.bf16.xpose.msra.mxu0 0
        %579 = vmatprep.subr.bf16.mxu0 0
        %580 = vmatpush1.bf16.xpose.msra.mxu0 0
        %581 = vmatprep.mubr.bf16.mxu0 0
        %582 = vmatmul.mubr.bf16.gmra.mrb[0].mxu0 %v544
        %v583 = vpop.f32.mrb[0].mxu0
        %v584 = vadd.f32 0.0, %v583
        %v585 = vpop.f32.mrb[0].mxu0
        %v586 = vpop.f32.mrb[0].mxu0
        %v587 = vpop.f32.mrb[0].mxu0
        %588 = vdwg.mxu0
        %v589 = vsel %vm476, %v584, -inf
        %590 = vmax.xlane.f32.xlu0 %v589
        %v591 = vpop.xlane.xlu0 %590
        %v592 = vsub.f32 %v584, %v591
        %v593 = vmul.f32 %v592, 1.442695
        %v594 = vpow.pop %v593
        %v595 = vsel %vm476, %v594, 0.0
        %596 = vadd.xlane.f32.xlu0 %v595
        %v597 = vpop.xlane.xlu0 %596
        %v598 = vpack.c.bf16 %v594, %v594
        %599 = vrot.lane.b32.xlu0 %v425, 48
        %v600 = vpop.permute.xlu0 %599
        %v602 = vsel %vm476, %v598, 0
        %v605 = vsel %vm492, %v600, 0
        %607 = vmatprep.subr.bf16.mxu0 0
        %608 = vmatpush1.bf16.msra.mxu0 %v605
        %609 = vmatprep.subr.bf16.mxu0 0
        %610 = vmatpush1.bf16.msra.mxu0 0
        %611 = vmatprep.subr.bf16.mxu0 0
        %612 = vmatpush1.bf16.msra.mxu0 0
        %613 = vmatprep.subr.bf16.mxu0 0
        %614 = vmatpush1.bf16.msra.mxu0 0
        %615 = vmatprep.subr.bf16.mxu0 0
        %616 = vmatpush1.bf16.msra.mxu0 0
        %617 = vmatprep.subr.bf16.mxu0 0
        %618 = vmatpush1.bf16.msra.mxu0 0
        %619 = vmatprep.subr.bf16.mxu0 0
        %620 = vmatpush1.bf16.msra.mxu0 0
        %621 = vmatprep.subr.bf16.mxu0 0
        %622 = vmatpush1.bf16.msra.mxu0 0
        %623 = vmatprep.subr.bf16.mxu0 0
        %624 = vmatpush1.bf16.msra.mxu0 0
        %625 = vmatprep.subr.bf16.mxu0 0
        %626 = vmatpush1.bf16.msra.mxu0 0
        %627 = vmatprep.subr.bf16.mxu0 0
        %628 = vmatpush1.bf16.msra.mxu0 0
        %629 = vmatprep.subr.bf16.mxu0 0
        %630 = vmatpush1.bf16.msra.mxu0 0
        %631 = vmatprep.subr.bf16.mxu0 0
        %632 = vmatpush1.bf16.msra.mxu0 0
        %633 = vmatprep.subr.bf16.mxu0 0
        %634 = vmatpush1.bf16.msra.mxu0 0
        %635 = vmatprep.subr.bf16.mxu0 0
        %636 = vmatpush1.bf16.msra.mxu0 0
        %637 = vmatprep.subr.bf16.mxu0 0
        %638 = vmatpush1.bf16.msra.mxu0 0
        %639 = vmatprep.mubr.bf16.mxu0 0
        %640 = vmatmul.mubr.bf16.gmra.mrb[0].mxu0 %v602
        %v641 = vpop.f32.mrb[0].mxu0
        %v642 = vadd.f32 0.0, %v641
        %v643 = vpop.f32.mrb[0].mxu0
        %v644 = vpop.f32.mrb[0].mxu0
        %v645 = vpop.f32.mrb[0].mxu0
        %646 = vdwg.mxu0
        %v647 = vrcp.pop %v597
        %v648 = vmul.f32 %v642, %v647
        %650 = vrot.lane.b32.xlu0 %v648, 16
        %v651 = vpop.permute.xlu0 %650
        %vm653 = vcmask 261248
        %654 = vst.msk [vmem:[#allocation2] sm:$0xff] %vm653, %v651
        %v655 = vld [vmem:[%s4] sm:$0x3]
        %v657 = vsel %vm376, %v313, 0
        %v660 = vsel %vm380, %v655, 0
        %662 = vmatprep.subr.bf16.mxu0 0
        %663 = vmatpush1.bf16.msra.mxu0 %v660
        %664 = vmatprep.subr.bf16.mxu0 0
        %665 = vmatpush1.bf16.msra.mxu0 0
        %666 = vmatprep.subr.bf16.mxu0 0
        %667 = vmatpush1.bf16.msra.mxu0 0
        %668 = vmatprep.subr.bf16.mxu0 0
        %669 = vmatpush1.bf16.msra.mxu0 0
        %670 = vmatprep.subr.bf16.mxu0 0
        %671 = vmatpush1.bf16.msra.mxu0 0
        %672 = vmatprep.subr.bf16.mxu0 0
        %673 = vmatpush1.bf16.msra.mxu0 0
        %674 = vmatprep.subr.bf16.mxu0 0
        %675 = vmatpush1.bf16.msra.mxu0 0
        %676 = vmatprep.subr.bf16.mxu0 0
        %677 = vmatpush1.bf16.msra.mxu0 0
        %678 = vmatprep.subr.bf16.mxu0 0
        %679 = vmatpush1.bf16.msra.mxu0 0
        %680 = vmatprep.subr.bf16.mxu0 0
        %681 = vmatpush1.bf16.msra.mxu0 0
        %682 = vmatprep.subr.bf16.mxu0 0
        %683 = vmatpush1.bf16.msra.mxu0 0
        %684 = vmatprep.subr.bf16.mxu0 0
        %685 = vmatpush1.bf16.msra.mxu0 0
        %686 = vmatprep.subr.bf16.mxu0 0
        %687 = vmatpush1.bf16.msra.mxu0 0
        %688 = vmatprep.subr.bf16.mxu0 0
        %689 = vmatpush1.bf16.msra.mxu0 0
        %690 = vmatprep.subr.bf16.mxu0 0
        %691 = vmatpush1.bf16.msra.mxu0 0
        %692 = vmatprep.subr.bf16.mxu0 0
        %693 = vmatpush1.bf16.msra.mxu0 0
        %694 = vmatprep.mubr.bf16.mxu0 0
        %695 = vmatmul.mubr.bf16.gmra.mrb[0].mxu0 %v657
        %v696 = vpop.f32.mrb[0].mxu0
        %v697 = vadd.f32 0.0, %v696
        %v698 = vpop.f32.mrb[0].mxu0
        %v699 = vpop.f32.mrb[0].mxu0
        %v700 = vpop.f32.mrb[0].mxu0
        %701 = vdwg.mxu0
        %v702 = vld [vmem:[#allocation2] sm:$0xff]
        %v703 = vmul.f32 %v702, %v697
        %v704 = vpack.c.bf16 %v703, %v703
        %v705 = vld [vmem:[%s6] sm:$0xf]
        %v706 = vld [vmem:[%s6 + $0x4] sm:$0xf]
        %v707 = vld [vmem:[%s6 + $0x8] sm:$0xf]
        %v708 = vld [vmem:[%s6 + $0xc] sm:$0xf]
        %v713 = vunpack.c.l.b16 %v705
        %v714 = vunpack.c.l.b16 %v706
        %v715 = vunpack.c.l.b16 %v707
        %v716 = vunpack.c.l.b16 %v708
        %v717 = vpack.c.b16 %v714, %v713
        %v718 = vpack.c.b16 %v716, %v715
        %722 = vrot.lane.b32.xlu0 %v697, 96
        %v723 = vpop.permute.xlu0 %722
        %v726 = vsel %vm331, %v704, 0
        %728 = vmatprep.subr.bf16.mxu0 0
        %729 = vmatpush1.bf16.msra.mxu0 %v717
        %730 = vmatprep.subr.bf16.mxu0 0
        %731 = vmatpush1.bf16.msra.mxu0 %v718
        %732 = vmatprep.subr.bf16.mxu0 0
        %733 = vmatpush1.bf16.msra.mxu0 0
        %734 = vmatprep.subr.bf16.mxu0 0
        %735 = vmatpush1.bf16.msra.mxu0 0
        %736 = vmatprep.subr.bf16.mxu0 0
        %737 = vmatpush1.bf16.msra.mxu0 0
        %738 = vmatprep.subr.bf16.mxu0 0
        %739 = vmatpush1.bf16.msra.mxu0 0
        %740 = vmatprep.subr.bf16.mxu0 0
        %741 = vmatpush1.bf16.msra.mxu0 0
        %742 = vmatprep.subr.bf16.mxu0 0
        %743 = vmatpush1.bf16.msra.mxu0 0
        %744 = vmatprep.subr.bf16.mxu0 0
        %745 = vmatpush1.bf16.msra.mxu0 0
        %746 = vmatprep.subr.bf16.mxu0 0
        %747 = vmatpush1.bf16.msra.mxu0 0
        %748 = vmatprep.subr.bf16.mxu0 0
        %749 = vmatpush1.bf16.msra.mxu0 0
        %750 = vmatprep.subr.bf16.mxu0 0
        %751 = vmatpush1.bf16.msra.mxu0 0
        %752 = vmatprep.subr.bf16.mxu0 0
        %753 = vmatpush1.bf16.msra.mxu0 0
        %754 = vmatprep.subr.bf16.mxu0 0
        %755 = vmatpush1.bf16.msra.mxu0 0
        %756 = vmatprep.subr.bf16.mxu0 0
        %757 = vmatpush1.bf16.msra.mxu0 0
        %758 = vmatprep.subr.bf16.mxu0 0
        %759 = vmatpush1.bf16.msra.mxu0 0
        %760 = vmatprep.mubr.bf16.mxu0 0
        %761 = vmatmul.mubr.bf16.gmra.mrb[0].mxu0 %v726
        %v762 = vpop.f32.mrb[0].mxu0
        %v763 = vadd.f32 %v723, %v762
        %v764 = vpop.f32.mrb[0].mxu0
        %v765 = vpop.f32.mrb[0].mxu0
        %v766 = vpop.f32.mrb[0].mxu0
        %767 = vdwg.mxu0
        %768 = vst.msk [vmem:[%s295] sm:$0xff] %vm331, %v763
        %s769 = sand.u32 %s191, 1
        %s770 = scalar_lea.sflag [#allocation4], %s769
        %s771 = sand.u32 %s191, 1
        %s772 = smul.addr %s771, 8
        %s773 = scalar_lea.vmem [#allocation3], %s772
        // Predicated region
        $region49: #{tpu_custom_call.1} parent=47 // pred_check
          %p774 = pneg %p201
        $region50: #{tpu_custom_call.1} parent=47 // pred_check_branch
          %776 = sbr.rel (%p774) target = $region52
        $region51: #{tpu_custom_call.1} parent=47 // pred_region
          %s778 = ssub.s32 128, 128
          %779 = vsyncadd %s770, %s778
          %s780 = smul.addr %s21, 128
          %s781 = scalar_lea.hbm %s7, %s780
          %s783 = sshll.u32 %s773, 4
          %s784 = int_to_ptr.vmem [resolvable:$true] %s783
          %786 = dma.vmem_to_hbm [thread:$0]  %s784, 128, %s781, %s770
        $region52: #{tpu_custom_call.1} parent=47 // pred_fallthru
          _
      $region48: #{tpu_custom_call.1} parent=5 // pred_fallthru
        _
      %p787 = scmp.le.s32.totalorder 2, %s16
      // Predicated region
      $region53: #{tpu_custom_call.1} parent=5 // pred_check
        %p788 = pneg %p787
      $region54: #{tpu_custom_call.1} parent=5 // pred_check_branch
        %790 = sbr.rel (%p788) target = $region56
      $region55: #{tpu_custom_call.1} parent=5 // pred_region
        %s791 = ssub.s32 %s16, 2
        // Predicated region
        $region57: #{tpu_custom_call.1} parent=55 // pred_check
          %p792 = pneg %p207
        $region58: #{tpu_custom_call.1} parent=55 // pred_check_branch
          %794 = sbr.rel (%p792) target = $region60
        $region59: #{tpu_custom_call.1} parent=55 // pred_region
          %s795 = sand.u32 %s192, 1
          %s796 = scalar_lea.sflag [#allocation4], %s795
          %s797 = sand.u32 %s192, 1
          %s798 = smul.addr %s797, 8
          %s799 = scalar_lea.vmem [#allocation3], %s798
          %800 = dma.done %s796, 128
        $region60: #{tpu_custom_call.1} parent=55 // pred_fallthru
          _
      $region56: #{tpu_custom_call.1} parent=5 // pred_fallthru
        _
    $region6: #{tpu_custom_call.1} parent=1 // loop_footer
      %s20 = sadd.s32 1, %s16
    $region7: #{tpu_custom_call.1} parent=1 // loop_footer_branch
      %15 = sbr.rel target = $region3
    $region8: #{tpu_custom_call.1} parent=1 // loop_exit
      _
    %801 = vsyncpa [#allocation4], 1
    %s802 = scalar_lea.sflag [#allocation4], 1
    %803 = vsyncpa %s802, 1

</llo_original>
